<compile_context>
chip_gen: v5e
topology: v5e:2x2
jax: 0.10.0
libtpu: 0.0.40
codegen_flags: <defaults>
</compile_context>

<pallas_src>
import functools

import jax
import jax.numpy as jnp
from jax.experimental import pallas as pl
from jax.experimental.pallas import tpu as pltpu


def _focal_kernel(logits_ref, tgt_ref, out_ref, *, gamma, alpha, n_blocks,
                  n_j_inner, s_blk, hw_valid, need_mask, guard_overhang):
    """One grid step: (1, K, s_blk, 128) logits block -> (8, 128) partial sum."""
    o = pl.program_id(1)
    j = pl.program_id(2)
    jg = o * n_j_inner + j            # global spatial-block index (scalar)

    # The (bt, o) output block stays resident across the inner "arbitrary" axis
    # and acts as the accumulator.
    @pl.when(j == 0)
    def _():
        out_ref[...] = jnp.zeros_like(out_ref)

    K = logits_ref.shape[1]

    # --- per-class static loop (K is small and compile-time) -----------------
    # Per-tile upcast: logits may be bf16 and targets int8/int16 in HBM.
    xs = [logits_ref[0, k].astype(jnp.float32) for k in range(K)]   # (s_blk,128)
    tgt = tgt_ref[0].astype(jnp.int32)                              # (s_blk,128)

    # log-softmax over the class axis without materializing (K, s, 128) temps.
    m = xs[0]
    for k in range(1, K):
        m = jnp.maximum(m, xs[k])
    se = jnp.exp(xs[0] - m)
    for k in range(1, K):
        se = se + jnp.exp(xs[k] - m)
    lse = m + jnp.log(se)

    # Gather x_t (and alpha_t) with per-class selects instead of a one-hot sum.
    x_t = xs[0]
    if alpha is not None:
        a_t = jnp.full(x_t.shape, alpha[0], dtype=jnp.float32)
    for k in range(1, K):
        sel = tgt == k
        x_t = jnp.where(sel, xs[k], x_t)
        if alpha is not None:
            a_t = jnp.where(sel, jnp.float32(alpha[k]), a_t)

    logpt = x_t - lse
    pt = jnp.exp(logpt)
    # Clamp so a few-ULP pt > 1 can never make the focal base negative (NaN
    # through the exp/log pow path for fractional gamma).
    omp = jnp.maximum(1.0 - pt, 0.0)

    g = float(gamma)
    if g == 0.0:
        focal = None
    elif g == 1.0:
        focal = omp
    elif float(int(g)) == g and 0 < int(g) <= 4:
        focal = omp
        for _ in range(int(g) - 1):
            focal = focal * omp        # gamma == 2 -> one VPU multiply
    else:
        focal = omp ** g

    scaled = logpt if alpha is None else a_t * logpt
    loss = -scaled if focal is None else -(focal * scaled)         # (s_blk,128)

    def accumulate(val):
        if s_blk % 8 == 0:
            # Fold to an (8, 128) partial with pure cross-vreg adds (no XLU).
            part = val.reshape(s_blk // 8, 8, 128).sum(axis=0)      # (8, 128)
            out_ref[...] = out_ref[...] + part[None, None]
        else:
            # Tiny tile (s_blk == full spatial extent): one sublane reduce.
            part = jnp.sum(val, axis=0, keepdims=True)              # (1, 128)
            out_ref[:, :, 0:1, :] = out_ref[:, :, 0:1, :] + part[None, None]

    if need_mask:
        last = n_blocks - 1
        if n_blocks > 1:
            @pl.when(jg < last)
            def _():
                accumulate(loss)       # interior blocks: no masking cost

        @pl.when(jg == last)
        def _():
            # Only the final spatial block carries lane padding / ragged tail.
            sub = jax.lax.broadcasted_iota(jnp.int32, loss.shape, 0)
            lane = jax.lax.broadcasted_iota(jnp.int32, loss.shape, 1)
            pos = last * (s_blk * 128) + sub * 128 + lane
            accumulate(jnp.where(pos < hw_valid, loss, 0.0))
        # jg > last (overhang step of the cdiv outer split): accumulate nothing.
    else:
        if guard_overhang:
            @pl.when(jg < n_blocks)
            def _():
                accumulate(loss)
        else:
            accumulate(loss)


def focal_loss(logits, target, *, gamma=2.0, alpha=None, size_average=True):
    """logits: (B, T, K, H, W) float (f32/bf16); target: (B, T, H, W) integer."""
    B, T, K, H, W = logits.shape
    BT = B * T
    HW = H * W
    n_rows = BT * HW

    # TODO(synk): ignore_index (dynamic-shape row drop) not implemented; this
    # kernel computes the module default ignore_index=None.

    t_dt = jnp.dtype(target.dtype)
    if (not jnp.issubdtype(t_dt, jnp.integer)) or t_dt.itemsize > 4:
        target = target.astype(jnp.int32)

    # Free dim merges (no HBM copy), keeping the caller's native dtypes.
    x = logits.reshape(BT, K, HW)
    tgt = target.reshape(BT, HW)

    # The (BT, K, S, 128) lane-dense layout needs HW % 128 == 0.  Padding below
    # is one extra HBM copy of the whole tensor — callers should keep H*W a
    # multiple of 128 to avoid it.
    HW_pad = ((HW + 127) // 128) * 128
    if HW_pad != HW:
        x = jnp.pad(x, ((0, 0), (0, 0), (0, HW_pad - HW)))
        tgt = jnp.pad(tgt, ((0, 0), (0, HW_pad - HW)))

    S_total = HW_pad // 128
    x = x.reshape(BT, K, S_total, 128)        # free split of the trailing dim
    tgt = tgt.reshape(BT, S_total, 128)

    l_isz = jnp.dtype(x.dtype).itemsize
    t_isz = jnp.dtype(tgt.dtype).itemsize

    # Generation-aware logits-block budget: ~2 MiB on v7x (64 MiB physical
    # VMEM), ~4 MiB on v5e/v6e (128 MiB physical).
    try:
        vmem_phys = int(pltpu.get_tpu_info().vmem_capacity_bytes)
    except Exception:
        vmem_phys = 64 * 1024 * 1024
    cap_bytes = (2 << 20) if vmem_phys <= (64 << 20) else (4 << 20)

    # s_blk: largest multiple of 32 sublanes under the cap, or the full spatial
    # extent for tiny inputs.  No exact-divisor requirement — the last block
    # may overhang S_total and is masked in-kernel.
    s_cap = max(1, cap_bytes // (K * 128 * l_isz))
    if S_total <= 32 or s_cap < 32:
        s_blk = S_total
    else:
        s_blk = min((s_cap // 32) * 32, (S_total // 32) * 32)
    n_blocks = pl.cdiv(S_total, s_blk)

    # Outer parallel split of the spatial blocks: both v7x TensorCores get work
    # even when BT is 1/odd; a plain serial loop on single-TC v5e/v6e.
    n_outer = 2 if n_blocks >= 2 else 1
    n_j = pl.cdiv(n_blocks, n_outer)
    guard_overhang = (n_outer * n_j) > n_blocks
    need_mask = (n_blocks * s_blk * 128) > HW

    # alpha is a module hyperparameter -> baked in as compile-time constants.
    if alpha is None:
        alpha_t = None
    elif isinstance(alpha, (float, int)):
        assert K == 2, "scalar alpha implies 2 classes (matches the torch module)"
        alpha_t = (float(alpha), 1.0 - float(alpha))
    else:
        alpha_t = tuple(float(a) for a in jnp.asarray(alpha).reshape(-1).tolist())
        assert len(alpha_t) == K

    kernel = functools.partial(
        _focal_kernel, gamma=float(gamma), alpha=alpha_t, n_blocks=n_blocks,
        n_j_inner=n_j, s_blk=s_blk, hw_valid=HW, need_mask=need_mask,
        guard_overhang=guard_overhang)

    def spatial_block(o, j):
        # Clamp so overhang steps of the cdiv outer split re-read the last
        # block (their accumulation is skipped inside the kernel).
        return jnp.minimum(o * n_j + j, n_blocks - 1)

    cost = pl.CostEstimate(
        flops=int((5 * K + 15) * BT * HW),
        transcendentals=int((K + 2) * BT * HW),
        bytes_accessed=int((K * l_isz + t_isz) * BT * HW_pad
                           + BT * n_outer * 8 * 128 * 4))

    vmem_limit = min(vmem_phys - (8 << 20), 64 << 20)
    vmem_limit = int(max(vmem_limit, 16 << 20))

    # NOTE: if xprof shows exposed DMA at small n_j on v6e, bump the logits
    # spec to pipeline_mode=pl.Buffered(3).
    partials = pl.pallas_call(
        kernel,
        out_shape=jax.ShapeDtypeStruct((BT, n_outer, 8, 128), jnp.float32),
        grid_spec=pltpu.PrefetchScalarGridSpec(
            num_scalar_prefetch=0,
            grid=(BT, n_outer, n_j),
            in_specs=[
                pl.BlockSpec((1, K, s_blk, 128),
                             lambda bt, o, j: (bt, 0, spatial_block(o, j), 0)),
                pl.BlockSpec((1, s_blk, 128),
                             lambda bt, o, j: (bt, spatial_block(o, j), 0)),
            ],
            out_specs=pl.BlockSpec((1, 1, 8, 128),
                                   lambda bt, o, j: (bt, o, 0, 0)),
        ),
        compiler_params=pltpu.CompilerParams(
            dimension_semantics=("parallel", "parallel", "arbitrary"),
            vmem_limit_bytes=vmem_limit),
        cost_estimate=cost,
    )(x, tgt)

    total = jnp.sum(partials)             # tiny (BT, n_outer, 8, 128) reduce
    if size_average:
        return total / jnp.float32(n_rows)
    return total


def focal_loss_ref(logits, target, *, gamma=2.0, alpha=None, size_average=True):
    B, T, K, H, W = logits.shape
    pred = jnp.transpose(logits.astype(jnp.float32), (0, 1, 3, 4, 2)).reshape(-1, K)
    tgt = target.reshape(-1).astype(jnp.int32)
    logp = jax.nn.log_softmax(pred, axis=-1)
    logpt = jnp.take_along_axis(logp, tgt[:, None], axis=1)[:, 0]
    pt = jnp.exp(logpt)
    if alpha is not None:
        if isinstance(alpha, (float, int)):
            a = jnp.array([float(alpha), 1.0 - float(alpha)], jnp.float32)
        else:
            a = jnp.asarray(alpha, jnp.float32)
        logpt = logpt * a[tgt]
    loss = -((1.0 - pt) ** gamma) * logpt
    return loss.mean() if size_average else loss.sum()


if __name__ == "__main__":
    # Module init (deterministic, in-script): gamma=2, per-class alpha list.
    gamma = 2.0
    alpha = [0.1, 0.2, 0.3, 0.4]

    key = jax.random.PRNGKey(0)
    k1, k2, k3, k4, k5, k6 = jax.random.split(key, 6)

    # Case 1: f32 logits, int32 targets, HW a multiple of 128 (no pad, no mask).
    B, T, K, H, W = 2, 2, 4, 16, 16
    logits1 = jax.random.normal(k1, (B, T, K, H, W), dtype=jnp.float32)
    gt1 = jax.random.randint(k2, (B, T, H, W), 0, K, dtype=jnp.int32)
    out1 = jax.block_until_ready(
        focal_loss(logits1, gt1, gamma=gamma, alpha=alpha, size_average=True))
    ref1 = focal_loss_ref(logits1, gt1, gamma=gamma, alpha=alpha, size_average=True)
    assert jnp.allclose(out1, ref1, rtol=1e-5, atol=1e-6), (out1, ref1)

    # Case 2: native bf16 logits + int8 targets (in-kernel per-tile upcast path).
    logits2 = jax.random.normal(k3, (B, T, K, H, W),
                                dtype=jnp.float32).astype(jnp.bfloat16)
    gt2 = jax.random.randint(k4, (B, T, H, W), 0, K, dtype=jnp.int32).astype(jnp.int8)
    out2 = jax.block_until_ready(
        focal_loss(logits2, gt2, gamma=gamma, alpha=alpha, size_average=True))
    ref2 = focal_loss_ref(logits2, gt2, gamma=gamma, alpha=alpha, size_average=True)
    assert jnp.allclose(out2, ref2, rtol=1e-5, atol=1e-6), (out2, ref2)

    # Case 3: ragged H*W (72*72 = 5184): exercises lane padding, the cdiv outer
    # split across two spatial blocks, last-block-only masking, and sum mode.
    H3, W3 = 72, 72
    logits3 = jax.random.normal(k5, (B, T, K, H3, W3), dtype=jnp.float32)
    gt3 = jax.random.randint(k6, (B, T, H3, W3), 0, K, dtype=jnp.int32).astype(jnp.int8)
    out3 = jax.block_until_ready(
        focal_loss(logits3, gt3, gamma=gamma, alpha=alpha, size_average=False))
    ref3 = focal_loss_ref(logits3, gt3, gamma=gamma, alpha=alpha, size_average=False)
    assert jnp.allclose(out3, ref3, rtol=1e-4, atol=1e-3), (out3, ref3)

    print("KERNEL_OK")
</pallas_src>

<mosaic_0001>
module attributes {stable_mosaic.version = 11 : i64} {
  func.func @_focal_kernel(%arg0: i32, %arg1: i32, %arg2: i32, %arg3: memref<1x4x2x128xf32, #tpu.memory_space<vmem>>, %arg4: memref<1x2x128xi32, #tpu.memory_space<vmem>>, %arg5: memref<1x1x8x128xf32, #tpu.memory_space<vmem>>) attributes {dimension_semantics = [#tpu.dimension_semantics<parallel>, #tpu.dimension_semantics<parallel>, #tpu.dimension_semantics<arbitrary>], iteration_bounds = array<i64: 4, 1, 1>, scalar_prefetch = 0 : i64, scratch_operands = 0 : i64, tpu.core_type = #tpu.core_type<tc>, window_params = [{transform_indices = @transform_0, window_bounds = array<i64: 1, 4, 2, 128>}, {transform_indices = @transform_1, window_bounds = array<i64: 1, 2, 128>}, {transform_indices = @transform_2, window_bounds = array<i64: 1, 1, 8, 128>}]} {
    %c0_i32 = arith.constant 0 : i32
    %0 = arith.cmpi eq, %arg2, %c0_i32 : i32
    %1 = arith.extui %0 : i1 to i32
    %c0_i32_0 = arith.constant 0 : i32
    %2 = arith.cmpi ne, %1, %c0_i32_0 : i32
    scf.if %2 {
      %cst_31 = arith.constant 0.000000e+00 : f32
      %62 = vector.broadcast %cst_31 : f32 to vector<1x1x8x128xf32>
      %c0_32 = arith.constant 0 : index
      %c0_33 = arith.constant 0 : index
      %c0_34 = arith.constant 0 : index
      %c0_35 = arith.constant 0 : index
      %63 = vector.load %arg5[%c0_32, %c0_33, %c0_34, %c0_35] : memref<1x1x8x128xf32, #tpu.memory_space<vmem>>, vector<1x1x8x128xf32>
      tpu.vector_store %arg5[%c0_32, %c0_33, %c0_34, %c0_35], %62 {strides = array<i32>} : memref<1x1x8x128xf32, #tpu.memory_space<vmem>>, vector<1x1x8x128xf32>,
    } else {
    }
    %c0 = arith.constant 0 : index
    %c0_1 = arith.constant 0 : index
    %c0_2 = arith.constant 0 : index
    %c0_3 = arith.constant 0 : index
    %3 = vector.load %arg3[%c0, %c0_1, %c0_2, %c0_3] : memref<1x4x2x128xf32, #tpu.memory_space<vmem>>, vector<1x1x2x128xf32>
    %4 = vector.shape_cast %3 : vector<1x1x2x128xf32> to vector<2x128xf32>
    %c0_4 = arith.constant 0 : index
    %c1 = arith.constant 1 : index
    %c0_5 = arith.constant 0 : index
    %c0_6 = arith.constant 0 : index
    %5 = vector.load %arg3[%c0_4, %c1, %c0_5, %c0_6] : memref<1x4x2x128xf32, #tpu.memory_space<vmem>>, vector<1x1x2x128xf32>
    %6 = vector.shape_cast %5 : vector<1x1x2x128xf32> to vector<2x128xf32>
    %c0_7 = arith.constant 0 : index
    %c2 = arith.constant 2 : index
    %c0_8 = arith.constant 0 : index
    %c0_9 = arith.constant 0 : index
    %7 = vector.load %arg3[%c0_7, %c2, %c0_8, %c0_9] : memref<1x4x2x128xf32, #tpu.memory_space<vmem>>, vector<1x1x2x128xf32>
    %8 = vector.shape_cast %7 : vector<1x1x2x128xf32> to vector<2x128xf32>
    %c0_10 = arith.constant 0 : index
    %c3 = arith.constant 3 : index
    %c0_11 = arith.constant 0 : index
    %c0_12 = arith.constant 0 : index
    %9 = vector.load %arg3[%c0_10, %c3, %c0_11, %c0_12] : memref<1x4x2x128xf32, #tpu.memory_space<vmem>>, vector<1x1x2x128xf32>
    %10 = vector.shape_cast %9 : vector<1x1x2x128xf32> to vector<2x128xf32>
    %c0_13 = arith.constant 0 : index
    %c0_14 = arith.constant 0 : index
    %c0_15 = arith.constant 0 : index
    %11 = vector.load %arg4[%c0_13, %c0_14, %c0_15] : memref<1x2x128xi32, #tpu.memory_space<vmem>>, vector<1x2x128xi32>
    %12 = vector.shape_cast %11 : vector<1x2x128xi32> to vector<2x128xi32>
    %13 = arith.maximumf %4, %6 : vector<2x128xf32>
    %14 = arith.maximumf %13, %8 : vector<2x128xf32>
    %15 = arith.maximumf %14, %10 : vector<2x128xf32>
    %16 = arith.subf %4, %15 : vector<2x128xf32>
    %17 = math.exp %16 : vector<2x128xf32>
    %18 = arith.subf %6, %15 : vector<2x128xf32>
    %19 = math.exp %18 : vector<2x128xf32>
    %20 = arith.addf %17, %19 : vector<2x128xf32>
    %21 = arith.subf %8, %15 : vector<2x128xf32>
    %22 = math.exp %21 : vector<2x128xf32>
    %23 = arith.addf %20, %22 : vector<2x128xf32>
    %24 = arith.subf %10, %15 : vector<2x128xf32>
    %25 = math.exp %24 : vector<2x128xf32>
    %26 = arith.addf %23, %25 : vector<2x128xf32>
    %27 = math.log %26 : vector<2x128xf32>
    %28 = arith.addf %15, %27 : vector<2x128xf32>
    %cst = arith.constant 1.000000e-01 : f32
    %29 = vector.broadcast %cst : f32 to vector<2x128xf32>
    %c1_i32 = arith.constant 1 : i32
    %30 = vector.broadcast %c1_i32 : i32 to vector<2x128xi32>
    %31 = arith.cmpi eq, %12, %30 : vector<2x128xi32>
    %32 = arith.select %31, %6, %4 : vector<2x128xi1>, vector<2x128xf32>
    %cst_16 = arith.constant 2.000000e-01 : f32
    %33 = vector.broadcast %cst_16 : f32 to vector<2x128xf32>
    %34 = arith.select %31, %33, %29 : vector<2x128xi1>, vector<2x128xf32>
    %c2_i32 = arith.constant 2 : i32
    %35 = vector.broadcast %c2_i32 : i32 to vector<2x128xi32>
    %36 = arith.cmpi eq, %12, %35 : vector<2x128xi32>
    %37 = arith.select %36, %8, %32 : vector<2x128xi1>, vector<2x128xf32>
    %cst_17 = arith.constant 3.000000e-01 : f32
    %38 = vector.broadcast %cst_17 : f32 to vector<2x128xf32>
    %39 = arith.select %36, %38, %34 : vector<2x128xi1>, vector<2x128xf32>
    %c3_i32 = arith.constant 3 : i32
    %40 = vector.broadcast %c3_i32 : i32 to vector<2x128xi32>
    %41 = arith.cmpi eq, %12, %40 : vector<2x128xi32>
    %42 = arith.select %41, %10, %37 : vector<2x128xi1>, vector<2x128xf32>
    %cst_18 = arith.constant 4.000000e-01 : f32
    %43 = vector.broadcast %cst_18 : f32 to vector<2x128xf32>
    %44 = arith.select %41, %43, %39 : vector<2x128xi1>, vector<2x128xf32>
    %45 = arith.subf %42, %28 : vector<2x128xf32>
    %46 = math.exp %45 : vector<2x128xf32>
    %cst_19 = arith.constant 1.000000e+00 : f32
    %47 = vector.broadcast %cst_19 : f32 to vector<2x128xf32>
    %48 = arith.subf %47, %46 : vector<2x128xf32>
    %cst_20 = arith.constant 0.000000e+00 : f32
    %49 = vector.broadcast %cst_20 : f32 to vector<2x128xf32>
    %50 = arith.maximumf %48, %49 : vector<2x128xf32>
    %51 = arith.mulf %50, %50 : vector<2x128xf32>
    %52 = arith.mulf %44, %45 : vector<2x128xf32>
    %53 = arith.mulf %51, %52 : vector<2x128xf32>
    %cst_21 = arith.constant 0.000000e+00 : f32
    %54 = vector.broadcast %cst_21 : f32 to vector<2x128xf32>
    %55 = arith.subf %54, %53 : vector<2x128xf32>
    %cst_22 = arith.constant dense<0.000000e+00> : vector<128xf32>
    %56 = vector.multi_reduction <add>, %55, %cst_22 [0] : vector<2x128xf32> to vector<128xf32>
    %57 = vector.shape_cast %56 : vector<128xf32> to vector<1x128xf32>
    %c0_23 = arith.constant 0 : index
    %c0_24 = arith.constant 0 : index
    %c0_25 = arith.constant 0 : index
    %c0_26 = arith.constant 0 : index
    %58 = vector.load %arg5[%c0_23, %c0_24, %c0_25, %c0_26] : memref<1x1x8x128xf32, #tpu.memory_space<vmem>>, vector<1x1x1x128xf32>
    %59 = vector.shape_cast %57 : vector<1x128xf32> to vector<1x1x1x128xf32>
    %60 = arith.addf %58, %59 : vector<1x1x1x128xf32>
    %c0_27 = arith.constant 0 : index
    %c0_28 = arith.constant 0 : index
    %c0_29 = arith.constant 0 : index
    %c0_30 = arith.constant 0 : index
    %61 = vector.load %arg5[%c0_27, %c0_28, %c0_29, %c0_30] : memref<1x1x8x128xf32, #tpu.memory_space<vmem>>, vector<1x1x1x128xf32>
    tpu.vector_store %arg5[%c0_27, %c0_28, %c0_29, %c0_30], %60 {strides = array<i32>} : memref<1x1x8x128xf32, #tpu.memory_space<vmem>>, vector<1x1x1x128xf32>,
    return
  }
  func.func @transform_0(%arg0: i32, %arg1: i32, %arg2: i32) -> (i32, i32, i32, i32) {
    %c1_i32 = arith.constant 1 : i32
    %0 = arith.muli %arg1, %c1_i32 : i32
    %1 = arith.addi %0, %arg2 : i32
    %c0_i32 = arith.constant 0 : i32
    %2 = arith.minsi %1, %c0_i32 : i32
    %c0_i32_0 = arith.constant 0 : i32
    %c0_i32_1 = arith.constant 0 : i32
    %c0_i32_2 = arith.constant 0 : i32
    return %arg0, %c0_i32_0, %2, %c0_i32_1 : i32, i32, i32, i32
  }
  func.func @transform_1(%arg0: i32, %arg1: i32, %arg2: i32) -> (i32, i32, i32) {
    %c1_i32 = arith.constant 1 : i32
    %0 = arith.muli %arg1, %c1_i32 : i32
    %1 = arith.addi %0, %arg2 : i32
    %c0_i32 = arith.constant 0 : i32
    %2 = arith.minsi %1, %c0_i32 : i32
    %c0_i32_0 = arith.constant 0 : i32
    %c0_i32_1 = arith.constant 0 : i32
    return %arg0, %2, %c0_i32_0 : i32, i32, i32
  }
  func.func @transform_2(%arg0: i32, %arg1: i32, %arg2: i32) -> (i32, i32, i32, i32) {
    %c0_i32 = arith.constant 0 : i32
    %c0_i32_0 = arith.constant 0 : i32
    %c0_i32_1 = arith.constant 0 : i32
    return %arg0, %arg1, %c0_i32, %c0_i32_0 : i32, i32, i32, i32
  }
}

</mosaic_0001>

<llo_original>
// kernel: tpu_custom_call.1
$region0: #{tpu_custom_call.1}
  #allocation0 [shape = 'u32[]', space=smem, size = 0x4, offset = 0x4, fixed_abs, tag = 'smem constant byte address 0x4 - core index']
  #allocation1 [shape = 'u32[72,128]{1,0:T(1,128)}', space=vmem, size = 0x9000, scoped, tag = 'internal scratch']
  %s0 = inlined_call_operand.hbm [shape: f32[4,4,2,128], index: 0, kind: input, shape index: {}]
  %s1 = inlined_call_operand.hbm [shape: s32[4,2,128], index: 1, kind: input, shape index: {}]
  %s2 = inlined_call_operand.hbm [shape: f32[4,1,8,128], index: 2, kind: output, shape index: {}]
  %s3 = sld [smem:[#allocation0]]
  $region53: #{tpu_custom_call.1} parent=0
    _
  %s5 = ssub.s32 1, %s3
  %s6 = scalar_select 0, %s5, %s3
  $region1: #{tpu_custom_call.1} parent=0
    #allocation2 [shape = 'u8[8192]{0}', space=vmem, size = 0x2000, scoped, tag = 'input window, operand 0']
    #allocation3 [shape = 's32[2]{0}', space=sflag, size = 0x8, scoped, tag = 'scoped memory for tpu_custom_call.1']
    #allocation4 [shape = 's32[2]{0}', space=sflag, size = 0x8, scoped, tag = 'scoped memory for tpu_custom_call.1']
    #allocation5 [shape = 'u8[2048]{0}', space=vmem, size = 0x800, scoped, tag = 'input window, operand 1']
    #allocation6 [shape = 's32[2]{0}', space=sflag, size = 0x8, scoped, tag = 'scoped memory for tpu_custom_call.1']
    #allocation7 [shape = 'u8[8192]{0}', space=vmem, size = 0x2000, scoped, tag = 'output window, operand 0']
    %7 = vsyncpa [#allocation3], 0
    %s8 = scalar_lea.sflag [#allocation3], 1
    %9 = vsyncpa %s8, 0
    %10 = vsyncpa [#allocation6], 0
    %s11 = scalar_lea.sflag [#allocation6], 1
    %12 = vsyncpa %s11, 0
    %13 = vsyncpa [#allocation4], 0
    %s14 = scalar_lea.sflag [#allocation4], 1
    %15 = vsyncpa %s14, 0
    loop: start=0, step=1, limit=6
    $region2: #{tpu_custom_call.1} parent=1 // loop_pre_header
      _
    $region3: #{tpu_custom_call.1} parent=1 // loop_header
      %s17 = sphi 0, %s21
      %p18 = scmp.ge.s32.totalorder %s17, 6
      %s24 = sphi 0, %s43
      %s25 = sphi 0, %s39
      %s26 = sphi 0, %s35
      %s27 = sphi 0, %s24
      %s28 = sphi 0, %s25
      %s29 = sphi 0, %s26
      %s30 = sphi 0, %s27
      %s31 = sphi 0, %s28
      %s32 = sphi 0, %s29
      %s54 = sphi 0, %s56
      %s57 = sphi 0, %s54
      %s58 = sphi 0, %s57
      %s74 = sphi 0, %s58
      %s88 = sphi 0, %s90
      %s91 = sphi 0, %s88
      %s92 = sphi 0, %s91
      %s108 = sphi 0, %s92
      %s116 = sphi 0, %s118
      %s119 = sphi 0, %s116
      %s120 = sphi 0, %s119
      %s136 = sphi 0, %s120
    $region4: #{tpu_custom_call.1} parent=1 // loop_header_branch
      %20 = sbr.rel (%p18) target = $region8
    $region5: #{tpu_custom_call.1} parent=1 // loop_body
      %s22 = ssub.s32 %s17, 1
      %s23 = ssub.s32 %s17, 2
      %s33 = sadd.s32 1, %s26
      %p34 = scmp.ge.s32.totalorder %s33, 1
      %s35 = scalar_select %p34, 0, %s33
      %s36 = sadd.s32 1, %s25
      %s37 = scalar_select %p34, %s36, %s25
      %p38 = scmp.ge.s32.totalorder %s37, 1
      %s39 = scalar_select %p38, 0, %s37
      %s40 = sadd.s32 1, %s24
      %s41 = scalar_select %p38, %s40, %s24
      %p42 = scmp.ge.s32.totalorder %s41, 4
      %s43 = scalar_select %p42, 0, %s41
      %s44 = sadd.s32 %s25, %s26
      %p45 = scmp.lt.s32.totalorder %s44, 0
      %s46 = scalar_select %p45, %s44, 0
      %s47 = sadd.s32 %s39, %s35
      %p48 = scmp.lt.s32.totalorder %s47, 0
      %s49 = scalar_select %p48, %s47, 0
      %s50 = ssub.s32 %s24, %s43
      %s51 = ssub.s32 %s46, %s49
      %s52 = sor.u32 %s50, %s51
      %p53 = scmp.eq.s32.totalorder %s52, 0
      %s55 = sadd.s32 %s54, 1
      %s56 = scalar_select %p53, %s54, %s55
      %p59 = pneg %p53
      %p60 = scmp.eq.s32.totalorder %s17, 3
      %p61 = por %p59, %p60
      %p62 = scmp.ne.s32.totalorder %s54, %s57
      %p63 = scmp.eq.s32.totalorder %s17, 0
      %p64 = por %p62, %p63
      %p65 = scmp.ne.s32.totalorder %s54, %s57
      %p66 = scmp.eq.s32.totalorder %s22, 3
      %p67 = por %p65, %p66
      %p68 = scmp.ne.s32.totalorder %s57, %s58
      %p69 = scmp.eq.s32.totalorder %s22, 0
      %p70 = por %p68, %p69
      %p71 = scmp.ne.s32.totalorder %s57, %s58
      %p72 = scmp.eq.s32.totalorder %s23, 3
      %p73 = por %p71, %p72
      %p75 = scmp.ne.s32.totalorder %s58, %s74
      %p76 = scmp.eq.s32.totalorder %s23, 0
      %p77 = por %p75, %p76
      %s78 = sadd.s32 %s25, %s26
      %p79 = scmp.lt.s32.totalorder %s78, 0
      %s80 = scalar_select %p79, %s78, 0
      %s81 = sadd.s32 %s39, %s35
      %p82 = scmp.lt.s32.totalorder %s81, 0
      %s83 = scalar_select %p82, %s81, 0
      %s84 = ssub.s32 %s24, %s43
      %s85 = ssub.s32 %s80, %s83
      %s86 = sor.u32 %s84, %s85
      %p87 = scmp.eq.s32.totalorder %s86, 0
      %s89 = sadd.s32 %s88, 1
      %s90 = scalar_select %p87, %s88, %s89
      %p93 = pneg %p87
      %p94 = scmp.eq.s32.totalorder %s17, 3
      %p95 = por %p93, %p94
      %p96 = scmp.ne.s32.totalorder %s88, %s91
      %p97 = scmp.eq.s32.totalorder %s17, 0
      %p98 = por %p96, %p97
      %p99 = scmp.ne.s32.totalorder %s88, %s91
      %p100 = scmp.eq.s32.totalorder %s22, 3
      %p101 = por %p99, %p100
      %p102 = scmp.ne.s32.totalorder %s91, %s92
      %p103 = scmp.eq.s32.totalorder %s22, 0
      %p104 = por %p102, %p103
      %p105 = scmp.ne.s32.totalorder %s91, %s92
      %p106 = scmp.eq.s32.totalorder %s23, 3
      %p107 = por %p105, %p106
      %p109 = scmp.ne.s32.totalorder %s92, %s108
      %p110 = scmp.eq.s32.totalorder %s23, 0
      %p111 = por %p109, %p110
      %s112 = ssub.s32 %s24, %s43
      %s113 = ssub.s32 %s25, %s39
      %s114 = sor.u32 %s112, %s113
      %p115 = scmp.eq.s32.totalorder %s114, 0
      %s117 = sadd.s32 %s116, 1
      %s118 = scalar_select %p115, %s116, %s117
      %p121 = pneg %p115
      %p122 = scmp.eq.s32.totalorder %s17, 3
      %p123 = por %p121, %p122
      %p124 = scmp.ne.s32.totalorder %s116, %s119
      %p125 = scmp.eq.s32.totalorder %s17, 0
      %p126 = por %p124, %p125
      %p127 = scmp.ne.s32.totalorder %s116, %s119
      %p128 = scmp.eq.s32.totalorder %s22, 3
      %p129 = por %p127, %p128
      %p130 = scmp.ne.s32.totalorder %s119, %s120
      %p131 = scmp.eq.s32.totalorder %s22, 0
      %p132 = por %p130, %p131
      %p133 = scmp.ne.s32.totalorder %s119, %s120
      %p134 = scmp.eq.s32.totalorder %s23, 3
      %p135 = por %p133, %p134
      %p137 = scmp.ne.s32.totalorder %s120, %s136
      %p138 = scmp.eq.s32.totalorder %s23, 0
      %p139 = por %p137, %p138
      %p140 = scmp.le.s32.totalorder 1, %s17
      %p141 = scmp.lt.s32.totalorder %s17, 5
      %p142 = pnand %p140, %p141
      %p143 = pneg %p142
      // Predicated region
      $region9: #{tpu_custom_call.1} parent=5 // pred_check
        _
      $region10: #{tpu_custom_call.1} parent=5 // pred_check_branch
        %145 = sbr.rel (%p142) target = $region12
      $region11: #{tpu_custom_call.1} parent=5 // pred_region
        %s146 = ssub.s32 %s17, 1
      $region12: #{tpu_custom_call.1} parent=5 // pred_fallthru
        _
      %p147 = scmp.lt.s32.totalorder %s17, 4
      // Predicated region
      $region13: #{tpu_custom_call.1} parent=5 // pred_check
        %p148 = pneg %p147
      $region14: #{tpu_custom_call.1} parent=5 // pred_check_branch
        %150 = sbr.rel (%p148) target = $region16
      $region15: #{tpu_custom_call.1} parent=5 // pred_region
        // Predicated region
        $region17: #{tpu_custom_call.1} parent=15 // pred_check
          %p151 = pneg %p64
        $region18: #{tpu_custom_call.1} parent=15 // pred_check_branch
          %153 = sbr.rel (%p151) target = $region20
        $region19: #{tpu_custom_call.1} parent=15 // pred_region
          %s154 = sand.u32 %s54, 1
          %s155 = scalar_lea.sflag [#allocation3], %s154
          %s156 = sand.u32 %s54, 1
          %s157 = smul.addr %s156, 8
          %s158 = scalar_lea.vmem [#allocation2], %s157
          %s159 = sadd.s32 %s25, %s26
          %p160 = scmp.lt.s32.totalorder %s159, 0
          %s161 = scalar_select %p160, %s159, 0
          %163 = vsyncadd %s155, 0
          %s164 = smul.addr %s24, 4
          %s165 = sadd.s32 %s161, %s164
          %s166 = smul.addr %s165, 2
          %s167 = scalar_lea.hbm %s0, %s166
          %s168 = sshll.u32 %s167, 4
          %s169 = int_to_ptr.hbm [resolvable:$true] %s168
          %s170 = sshll.u32 %s158, 4
          %s171 = int_to_ptr.vmem [resolvable:$true] %s170
          %176 = dma.hbm_to_vmem [thread:$0]  %s169, 128, %s171, %s155, 32, 32, 2
        $region20: #{tpu_custom_call.1} parent=15 // pred_fallthru
          _
        // Predicated region
        $region21: #{tpu_custom_call.1} parent=15 // pred_check
          %p177 = pneg %p98
        $region22: #{tpu_custom_call.1} parent=15 // pred_check_branch
          %179 = sbr.rel (%p177) target = $region24
        $region23: #{tpu_custom_call.1} parent=15 // pred_region
          %s180 = sand.u32 %s88, 1
          %s181 = scalar_lea.sflag [#allocation6], %s180
          %s182 = sand.u32 %s88, 1
          %s183 = smul.addr %s182, 2
          %s184 = scalar_lea.vmem [#allocation5], %s183
          %s185 = sadd.s32 %s25, %s26
          %p186 = scmp.lt.s32.totalorder %s185, 0
          %s187 = scalar_select %p186, %s185, 0
          %189 = vsyncadd %s181, 0
          %s190 = sadd.s32 %s187, %s24
          %s191 = smul.addr %s190, 2
          %s192 = scalar_lea.hbm %s1, %s191
          %s194 = sshll.u32 %s192, 4
          %s195 = int_to_ptr.hbm [resolvable:$true] %s194
          %s196 = sshll.u32 %s184, 4
          %s197 = int_to_ptr.vmem [resolvable:$true] %s196
          %199 = dma.hbm_to_vmem [thread:$0]  %s195, 32, %s197, %s181
        $region24: #{tpu_custom_call.1} parent=15 // pred_fallthru
          _
      $region16: #{tpu_custom_call.1} parent=5 // pred_fallthru
        _
      %p200 = scmp.le.s32.totalorder 1, %s17
      %p201 = scmp.lt.s32.totalorder %s17, 5
      %p202 = pnand %p200, %p201
      %p203 = pneg %p202
      // Predicated region
      $region25: #{tpu_custom_call.1} parent=5 // pred_check
        _
      $region26: #{tpu_custom_call.1} parent=5 // pred_check_branch
        %205 = sbr.rel (%p202) target = $region28
      $region27: #{tpu_custom_call.1} parent=5 // pred_region
        %s206 = ssub.s32 %s17, 1
        %s207 = sand.u32 %s57, 1
        %s208 = scalar_lea.sflag [#allocation3], %s207
        %s209 = sand.u32 %s57, 1
        %s210 = smul.addr %s209, 8
        %s211 = scalar_lea.vmem [#allocation2], %s210
        // Predicated region
        $region29: #{tpu_custom_call.1} parent=27 // pred_check
          %p212 = pneg %p70
        $region30: #{tpu_custom_call.1} parent=27 // pred_check_branch
          %214 = sbr.rel (%p212) target = $region32
        $region31: #{tpu_custom_call.1} parent=27 // pred_region
          %216 = dma.done %s208, 128
        $region32: #{tpu_custom_call.1} parent=27 // pred_fallthru
          _
        %s217 = sand.u32 %s91, 1
        %s218 = scalar_lea.sflag [#allocation6], %s217
        %s219 = sand.u32 %s91, 1
        %s220 = smul.addr %s219, 2
        %s221 = scalar_lea.vmem [#allocation5], %s220
        // Predicated region
        $region33: #{tpu_custom_call.1} parent=27 // pred_check
          %p222 = pneg %p104
        $region34: #{tpu_custom_call.1} parent=27 // pred_check_branch
          %224 = sbr.rel (%p222) target = $region36
        $region35: #{tpu_custom_call.1} parent=27 // pred_region
          %226 = dma.done %s218, 32
        $region36: #{tpu_custom_call.1} parent=27 // pred_fallthru
          _
        %s227 = sand.u32 %s57, 1
        %s228 = scalar_lea.sflag [#allocation3], %s227
        %s229 = sand.u32 %s57, 1
        %s230 = smul.addr %s229, 8
        %s231 = scalar_lea.vmem [#allocation2], %s230
        %p232 = pneg %p70
        %p233 = pneg %p67
        %s234 = sand.u32 %s91, 1
        %s235 = scalar_lea.sflag [#allocation6], %s234
        %s236 = sand.u32 %s91, 1
        %s237 = smul.addr %s236, 2
        %s238 = scalar_lea.vmem [#allocation5], %s237
        %p239 = pneg %p104
        %p240 = pneg %p101
        %p241 = pneg %p132
        %p242 = pneg %p129
        %s243 = sand.u32 %s119, 1
        %s244 = scalar_lea.sflag [#allocation4], %s243
        %s245 = sand.u32 %s119, 1
        %s246 = smul.addr %s245, 8
        %s247 = scalar_lea.vmem [#allocation7], %s246
        %s248 = sadd.s32 %s28, %s29
        %p249 = scmp.lt.s32.totalorder %s248, 0
        %s250 = scalar_select %p249, %s248, 0
        %s251 = sadd.s32 %s28, %s29
        %p252 = scmp.lt.s32.totalorder %s251, 0
        %s253 = scalar_select %p252, %s251, 0
        %p254 = scmp.eq.s32.totalorder %s29, 0
        // Predicated region
        $region37: #{tpu_custom_call.1} parent=27 // pred_check
          %p255 = pneg %p254
        $region38: #{tpu_custom_call.1} parent=27 // pred_check_branch
          %257 = sbr.rel (%p255) target = $region40
        $region39: #{tpu_custom_call.1} parent=27 // pred_region
          %258 = vst [vmem:[%s247] sm:$0xff] 0.0
        $region40: #{tpu_custom_call.1} parent=27 // pred_fallthru
          _
        %v259 = vld [vmem:[%s211] sm:$0x3]
        %s260 = scalar_lea.vmem %s211, 2 [#allocation2]
        %v261 = vld [vmem:[%s260] sm:$0x3]
        %s262 = scalar_lea.vmem %s211, 4 [#allocation2]
        %v263 = vld [vmem:[%s262] sm:$0x3]
        %s264 = scalar_lea.vmem %s211, 6 [#allocation2]
        %v265 = vld [vmem:[%s264] sm:$0x3]
        %v266 = vld [vmem:[%s221] sm:$0x3]
        %v267 = vmax.f32 %v259, %v261
        %v268 = vmax.f32 %v267, %v263
        %v269 = vmax.f32 %v268, %v265
        %v270 = vsub.f32 %v259, %v269
        %v271 = vmul.f32 %v270, 1.442695
        %v272 = vpow.pop %v271
        %v273 = vsub.f32 %v261, %v269
        %v274 = vmul.f32 %v273, 1.442695
        %v275 = vpow.pop %v274
        %v276 = vadd.f32 %v272, %v275
        %v277 = vsub.f32 %v263, %v269
        %v278 = vmul.f32 %v277, 1.442695
        %v279 = vpow.pop %v278
        %v280 = vadd.f32 %v276, %v279
        %v281 = vsub.f32 %v265, %v269
        %v282 = vmul.f32 %v281, 1.442695
        %v283 = vpow.pop %v282
        %v284 = vadd.f32 %v280, %v283
        %v285 = vlog2.pop %v284
        %v286 = vmul.f32 %v285, 0.6931472
        %v287 = vadd.f32 %v269, %v286
        %vm288 = vcmp.eq.s32.totalorder %v266, 1
        %v289 = vsel %vm288, %v261, %v259
        %v290 = vsel %vm288, 0.2, 0.1
        %vm291 = vcmp.eq.s32.totalorder %v266, 2
        %v292 = vsel %vm291, %v263, %v289
        %v293 = vsel %vm291, 0.3, %v290
        %vm294 = vcmp.eq.s32.totalorder %v266, 3
        %v295 = vsel %vm294, %v265, %v292
        %v296 = vsel %vm294, 0.4, %v293
        %v297 = vsub.f32 %v295, %v287
        %v298 = vmul.f32 %v297, 1.442695
        %v299 = vpow.pop %v298
        %v300 = vsub.f32 1.0, %v299
        %v301 = vmax.f32 %v300, 0.0
        %v302 = vmul.f32 %v301, %v301
        %v303 = vmul.f32 %v296, %v297
        %v304 = vmul.f32 %v302, %v303
        %v305 = vsub.f32 0.0, %v304
        %vm306 = vcmask 1041408
        %v307 = vsel %vm306, %v305, 0.0
        %v308 = vrot.slane %v307, 4
        %v309 = vadd.f32 %v307, %v308
        %v310 = vrot.slane %v309, 2
        %v311 = vadd.f32 %v309, %v310
        %v312 = vrot.slane %v311, 1
        %v313 = vadd.f32 %v311, %v312
        %v314 = vld [vmem:[%s247] sm:$0x1]
        %v315 = vadd.f32 %v314, %v313
        %316 = vst [vmem:[%s247] sm:$0x1] %v315
        %s317 = sand.u32 %s119, 1
        %s318 = scalar_lea.sflag [#allocation4], %s317
        %s319 = sand.u32 %s119, 1
        %s320 = smul.addr %s319, 8
        %s321 = scalar_lea.vmem [#allocation7], %s320
        // Predicated region
        $region41: #{tpu_custom_call.1} parent=27 // pred_check
          %p322 = pneg %p129
        $region42: #{tpu_custom_call.1} parent=27 // pred_check_branch
          %324 = sbr.rel (%p322) target = $region44
        $region43: #{tpu_custom_call.1} parent=27 // pred_region
          %326 = vsyncadd %s318, 0
          %s327 = sadd.s32 %s28, %s27
          %s328 = smul.addr %s327, 8
          %s329 = scalar_lea.hbm %s2, %s328
          %s331 = sshll.u32 %s321, 4
          %s332 = int_to_ptr.vmem [resolvable:$true] %s331
          %s333 = sshll.u32 %s329, 4
          %s334 = int_to_ptr.hbm [resolvable:$true] %s333
          %336 = dma.vmem_to_hbm [thread:$0]  %s332, 128, %s334, %s318
        $region44: #{tpu_custom_call.1} parent=27 // pred_fallthru
          _
      $region28: #{tpu_custom_call.1} parent=5 // pred_fallthru
        _
      %p337 = scmp.le.s32.totalorder 2, %s17
      // Predicated region
      $region45: #{tpu_custom_call.1} parent=5 // pred_check
        %p338 = pneg %p337
      $region46: #{tpu_custom_call.1} parent=5 // pred_check_branch
        %340 = sbr.rel (%p338) target = $region48
      $region47: #{tpu_custom_call.1} parent=5 // pred_region
        %s341 = ssub.s32 %s17, 2
        // Predicated region
        $region49: #{tpu_custom_call.1} parent=47 // pred_check
          %p342 = pneg %p135
        $region50: #{tpu_custom_call.1} parent=47 // pred_check_branch
          %344 = sbr.rel (%p342) target = $region52
        $region51: #{tpu_custom_call.1} parent=47 // pred_region
          %s345 = sand.u32 %s120, 1
          %s346 = scalar_lea.sflag [#allocation4], %s345
          %s347 = sand.u32 %s120, 1
          %s348 = smul.addr %s347, 8
          %s349 = scalar_lea.vmem [#allocation7], %s348
          %351 = dma.done %s346, 128
        $region52: #{tpu_custom_call.1} parent=47 // pred_fallthru
          _
      $region48: #{tpu_custom_call.1} parent=5 // pred_fallthru
        _
    $region6: #{tpu_custom_call.1} parent=1 // loop_footer
      %s21 = sadd.s32 1, %s17
    $region7: #{tpu_custom_call.1} parent=1 // loop_footer_branch
      %16 = sbr.rel target = $region3
    $region8: #{tpu_custom_call.1} parent=1 // loop_exit
      _
    %352 = vsyncpa [#allocation3], 1
    %s353 = scalar_lea.sflag [#allocation3], 1
    %354 = vsyncpa %s353, 1
    %355 = vsyncpa [#allocation6], 1
    %s356 = scalar_lea.sflag [#allocation6], 1
    %357 = vsyncpa %s356, 1
    %358 = vsyncpa [#allocation4], 1
    %s359 = scalar_lea.sflag [#allocation4], 1
    %360 = vsyncpa %s359, 1

</llo_original>
